<compile_context>
chip_gen: v7x
topology: tpu7x:2x2x1
jax: 0.10.0
libtpu: 0.0.40
codegen_flags: <defaults>
</compile_context>

<pallas_src>
import functools

import jax
import jax.numpy as jnp
from jax import lax
from jax.experimental import pallas as pl
from jax.experimental.pallas import tpu as pltpu


def _round_up(x, m):
    return ((x + m - 1) // m) * m


# ---------------------------------------------------------------------------
# Path 1 ("onehot"): tables resident in VMEM, gather = one-hot matmul on MXU.
# ---------------------------------------------------------------------------
def _mf_onehot_kernel(uidx_ref, iidx_ref, utab_ref, itab_ref, o_ref):
    block_b = uidx_ref.shape[0]
    num_user = utab_ref.shape[0]
    num_item = itab_ref.shape[0]

    # One-hot selection matrices built from the (block_b, 1) id tiles.
    u_oh = (uidx_ref[...] == lax.broadcasted_iota(
        jnp.int32, (block_b, num_user), 1)).astype(utab_ref.dtype)
    i_oh = (iidx_ref[...] == lax.broadcasted_iota(
        jnp.int32, (block_b, num_item), 1)).astype(itab_ref.dtype)

    # Embedding gather on the MXU; f32 accumulation keeps gathered rows exact
    # for bf16 tables and (near-)exact for f32 tables.
    user_e = jnp.dot(u_oh, utab_ref[...], preferred_element_type=jnp.float32)
    item_e = jnp.dot(i_oh, itab_ref[...], preferred_element_type=jnp.float32)

    scores = jnp.sum(user_e * item_e, axis=-1)        # [block_b] f32
    o_ref[...] = scores.reshape(1, block_b)           # lane-dense store


def _mf_forward_onehot(user_table, item_table, uidx, iidx, block_b):
    B_pad = uidx.shape[0]
    num_blocks = B_pad // block_b

    uidx2 = uidx.reshape(B_pad, 1)
    iidx2 = iidx.reshape(B_pad, 1)

    out = pl.pallas_call(
        _mf_onehot_kernel,
        out_shape=jax.ShapeDtypeStruct((1, B_pad), jnp.float32),
        grid_spec=pltpu.PrefetchScalarGridSpec(
            num_scalar_prefetch=0,
            grid=(num_blocks,),
            in_specs=[
                pl.BlockSpec((block_b, 1), lambda i: (i, 0)),       # user ids
                pl.BlockSpec((block_b, 1), lambda i: (i, 0)),       # item ids
                pl.BlockSpec(user_table.shape, lambda i: (0, 0)),   # full user table
                pl.BlockSpec(item_table.shape, lambda i: (0, 0)),   # full item table
            ],
            out_specs=pl.BlockSpec((1, block_b), lambda i: (0, i)),
        ),
        compiler_params=pltpu.CompilerParams(
            dimension_semantics=("parallel",),   # batch tiles are independent
            vmem_limit_bytes=32 * 1024 * 1024,
        ),
    )(uidx2, iidx2, user_table, item_table)
    return out.reshape(B_pad)


# ---------------------------------------------------------------------------
# Path 2 ("dma"): HBM row gather with cross-step double-buffered async copies.
# ---------------------------------------------------------------------------
_DMA_UNROLL = 8


def _mf_dma_gather_kernel(block_b,
                          uidx_ref, iidx_ref,       # scalar prefetch (SMEM)
                          utab_hbm, itab_hbm,       # raw HBM refs (pl.ANY)
                          o_ref,                    # (1, block_b) output tile
                          ubuf, ibuf, sems):        # (2, block_b, D) x2, DMA (2,2)
    step = pl.program_id(0)
    nsteps = pl.num_programs(0)
    slot = step % 2
    nslot = 1 - slot

    def issue_tile(tile, s):
        base = tile * block_b

        @pl.loop(0, block_b, step=_DMA_UNROLL)
        def _(r0):
            for j in range(_DMA_UNROLL):              # static unroll: co-issue
                r = r0 + j                            # sloads + descriptor pushes
                uid = uidx_ref[base + r]
                iid = iidx_ref[base + r]
                pltpu.make_async_copy(
                    utab_hbm.at[uid], ubuf.at[s, r], sems.at[0, s]).start()
                pltpu.make_async_copy(
                    itab_hbm.at[iid], ibuf.at[s, r], sems.at[1, s]).start()

    def wait_tile(tile, s):
        base = tile * block_b

        @pl.loop(0, block_b, step=_DMA_UNROLL)
        def _(r0):
            for j in range(_DMA_UNROLL):
                r = r0 + j
                uid = uidx_ref[base + r]
                iid = iidx_ref[base + r]
                # Descriptors exactly match the issued copies (robust
                # accounting regardless of semaphore-increment semantics).
                pltpu.make_async_copy(
                    utab_hbm.at[uid], ubuf.at[s, r], sems.at[0, s]).wait()
                pltpu.make_async_copy(
                    itab_hbm.at[iid], ibuf.at[s, r], sems.at[1, s]).wait()

    # Prime slot 0 with the first tile.
    @pl.when(step == 0)
    def _():
        issue_tile(0, 0)

    # Prefetch the next tile into the other slot before blocking on this one,
    # so its transfers overlap this step's wait + compute + output writeback.
    @pl.when(step + 1 < nsteps)
    def _():
        issue_tile(step + 1, nslot)

    wait_tile(step, slot)

    u = ubuf[slot]
    v = ibuf[slot]
    if u.dtype == jnp.bfloat16 and v.dtype == jnp.bfloat16:
        # bf16 VPU on v6e/v7x: multiply in bf16, accumulate in f32.
        prod = (u * v).astype(jnp.float32)
    else:
        prod = u.astype(jnp.float32) * v.astype(jnp.float32)
    o_ref[...] = jnp.sum(prod, axis=-1).reshape(1, block_b)   # lane-dense store


def _mf_forward_dma(user_table, item_table, uidx, iidx, block_b):
    B_pad = uidx.shape[0]
    num_blocks = B_pad // block_b
    D = user_table.shape[1]

    scratch_bytes = 2 * block_b * D * (user_table.dtype.itemsize
                                       + item_table.dtype.itemsize)
    vmem_limit = max(32 * 1024 * 1024, scratch_bytes + (4 << 20))

    kernel = functools.partial(_mf_dma_gather_kernel, block_b)
    out = pl.pallas_call(
        kernel,
        out_shape=jax.ShapeDtypeStruct((1, B_pad), jnp.float32),
        grid_spec=pltpu.PrefetchScalarGridSpec(
            num_scalar_prefetch=2,                    # uidx, iidx -> SMEM
            grid=(num_blocks,),
            in_specs=[
                pl.BlockSpec(memory_space=pl.ANY),    # user table stays in HBM
                pl.BlockSpec(memory_space=pl.ANY),    # item table stays in HBM
            ],
            out_specs=pl.BlockSpec(
                (1, block_b), lambda i, u_ids, i_ids: (0, i)),
            scratch_shapes=[
                pltpu.VMEM((2, block_b, D), user_table.dtype),  # 2 slots, user rows
                pltpu.VMEM((2, block_b, D), item_table.dtype),  # 2 slots, item rows
                pltpu.SemaphoreType.DMA((2, 2)),                # [stream, slot]
            ],
        ),
        compiler_params=pltpu.CompilerParams(
            # Cross-step double buffering carries scratch / semaphore state
            # between grid steps, so this axis must stay "arbitrary".
            dimension_semantics=("arbitrary",),
            vmem_limit_bytes=vmem_limit,
        ),
    )(uidx, iidx, user_table, item_table)
    return out.reshape(B_pad)


# ---------------------------------------------------------------------------
# Dispatch
# ---------------------------------------------------------------------------
_ONEHOT_MAX_ROWS = 2048                  # bounds the (block_b, rows) one-hot temp
_ONEHOT_MAX_TABLE_BYTES = 8 * 1024 * 1024  # double-buffered tables stay in VMEM


def _legalize_block_b(B, block_b):
    """Blocks that do not cover the whole padded batch must be /128 on lanes."""
    if block_b >= B:
        return _round_up(B, 8)           # single tile: full-dim block is legal
    return max(128, (block_b // 128) * 128)


def mf_forward(user_table, item_table, user_idx, item_idx, *,
               block_b=None, path=None):
    """Pallas implementation of MF.forward(user, item) -> [B] scores."""
    assert user_table.ndim == 2 and item_table.ndim == 2
    assert user_table.shape[1] == item_table.shape[1]
    B = user_idx.shape[0]
    D = user_table.shape[1]
    num_user, num_item = user_table.shape[0], item_table.shape[0]

    if path is None:
        table_bytes = (user_table.size * user_table.dtype.itemsize
                       + item_table.size * item_table.dtype.itemsize)
        use_onehot = (max(num_user, num_item) <= _ONEHOT_MAX_ROWS
                      and table_bytes <= _ONEHOT_MAX_TABLE_BYTES)
        path = "onehot" if use_onehot else "dma"

    if block_b is None:
        if path == "onehot":
            # >= 2 tiles whenever B > 128 (v7x: two TCs share the parallel axis),
            # capped so the one-hot temporaries stay small.
            block_b = 256 if B > 512 else (128 if B > 128 else _round_up(B, 8))
        else:
            itemsize = max(user_table.dtype.itemsize, item_table.dtype.itemsize)
            cap = 256
            while cap > 128 and 4 * cap * D * itemsize > 16 * 1024 * 1024:
                cap //= 2                 # keep 2 slots x 2 streams of scratch small
            block_b = cap if B > cap else _round_up(B, 8)
    else:
        block_b = _legalize_block_b(B, block_b)

    B_pad = _round_up(B, block_b)

    uidx = user_idx.astype(jnp.int32)
    iidx = item_idx.astype(jnp.int32)
    if B_pad != B:
        # Ragged tail: pad with row 0 (always valid), drop the extra scores.
        pad = B_pad - B
        uidx = jnp.concatenate([uidx, jnp.zeros((pad,), jnp.int32)])
        iidx = jnp.concatenate([iidx, jnp.zeros((pad,), jnp.int32)])

    if path == "onehot":
        scores = _mf_forward_onehot(user_table, item_table, uidx, iidx, block_b)
    else:
        scores = _mf_forward_dma(user_table, item_table, uidx, iidx, block_b)
    return scores[:B]


if __name__ == "__main__":
    key = jax.random.PRNGKey(0)
    k_u, k_i, k_uid, k_iid, k_u2, k_i2, k_uid2, k_iid2 = jax.random.split(key, 8)

    # ---- Config 1: module's small demo config (VMEM-resident one-hot path).
    num_user, num_item, embedding_dim, batch = 16, 32, 32, 8

    # nn.Embedding default init is N(0, 1).  Values are rounded to
    # bf16-representable f32 so the one-hot MXU gather is exact regardless of
    # the f32-matmul pass configuration (semantics-preserving for a demo).
    user_table = jax.random.normal(k_u, (num_user, embedding_dim), jnp.float32)
    item_table = jax.random.normal(k_i, (num_item, embedding_dim), jnp.float32)
    user_table = user_table.astype(jnp.bfloat16).astype(jnp.float32)
    item_table = item_table.astype(jnp.bfloat16).astype(jnp.float32)

    user_idx = jax.random.randint(k_uid, (batch,), 0, num_user)
    item_idx = jax.random.randint(k_iid, (batch,), 0, num_item)

    score = jax.block_until_ready(
        mf_forward(user_table, item_table, user_idx, item_idx))
    ref = jnp.sum(jnp.take(user_table, user_idx, axis=0)
                  * jnp.take(item_table, item_idx, axis=0), axis=-1)
    assert score.shape == (batch,)
    assert jnp.allclose(score, ref, atol=1e-4, rtol=1e-4), (
        f"onehot path mismatch: max err {jnp.max(jnp.abs(score - ref))}")

    # ---- Config 2: force the HBM row-gather fallback on a bigger, ragged
    # batch (exercises padding, a multi-step grid and cross-step double
    # buffering).
    nu2, ni2, d2, b2 = 512, 768, 128, 300
    utab2 = jax.random.normal(k_u2, (nu2, d2), jnp.float32)
    itab2 = jax.random.normal(k_i2, (ni2, d2), jnp.float32)
    uid2 = jax.random.randint(k_uid2, (b2,), 0, nu2)
    iid2 = jax.random.randint(k_iid2, (b2,), 0, ni2)

    score2 = jax.block_until_ready(
        mf_forward(utab2, itab2, uid2, iid2, block_b=128, path="dma"))
    ref2 = jnp.sum(jnp.take(utab2, uid2, axis=0)
                   * jnp.take(itab2, iid2, axis=0), axis=-1)
    assert score2.shape == (b2,)
    assert jnp.allclose(score2, ref2, atol=1e-3, rtol=1e-3), (
        f"dma path mismatch: max err {jnp.max(jnp.abs(score2 - ref2))}")

    print("KERNEL_OK")
</pallas_src>

<mosaic_0001>
module attributes {stable_mosaic.version = 11 : i64} {
  func.func @_mf_onehot_kernel(%arg0: i32, %arg1: memref<8x1xi32, #tpu.memory_space<vmem>>, %arg2: memref<8x1xi32, #tpu.memory_space<vmem>>, %arg3: memref<16x32xf32, #tpu.memory_space<vmem>>, %arg4: memref<32x32xf32, #tpu.memory_space<vmem>>, %arg5: memref<1x8xf32, #tpu.memory_space<vmem>>) attributes {dimension_semantics = [#tpu.dimension_semantics<parallel>], iteration_bounds = array<i64: 1>, scalar_prefetch = 0 : i64, scratch_operands = 0 : i64, tpu.core_type = #tpu.core_type<tc>, window_params = [{transform_indices = @transform_0, window_bounds = array<i64: 8, 1>}, {transform_indices = @transform_1, window_bounds = array<i64: 8, 1>}, {pipeline_mode = #tpu.pipeline_mode<synchronous>, transform_indices = @transform_2, window_bounds = array<i64: 16, 32>}, {pipeline_mode = #tpu.pipeline_mode<synchronous>, transform_indices = @transform_3, window_bounds = array<i64: 32, 32>}, {transform_indices = @transform_4, window_bounds = array<i64: 1, 8>}]} {
    %c0 = arith.constant 0 : index
    %c0_0 = arith.constant 0 : index
    %0 = vector.load %arg1[%c0, %c0_0] : memref<8x1xi32, #tpu.memory_space<vmem>>, vector<8x1xi32>
    %1 = tpu.iota {dimensions = array<i32: 1>} : vector<8x16xi32>
    %2 = vector.broadcast %0 : vector<8x1xi32> to vector<8x16xi32>
    %3 = arith.cmpi eq, %2, %1 : vector<8x16xi32>
    %4 = arith.extui %3 : vector<8x16xi1> to vector<8x16xi32>
    %5 = arith.sitofp %4 : vector<8x16xi32> to vector<8x16xf32>
    %c0_1 = arith.constant 0 : index
    %c0_2 = arith.constant 0 : index
    %6 = vector.load %arg2[%c0_1, %c0_2] : memref<8x1xi32, #tpu.memory_space<vmem>>, vector<8x1xi32>
    %7 = tpu.iota {dimensions = array<i32: 1>} : vector<8x32xi32>
    %8 = vector.broadcast %6 : vector<8x1xi32> to vector<8x32xi32>
    %9 = arith.cmpi eq, %8, %7 : vector<8x32xi32>
    %10 = arith.extui %9 : vector<8x32xi1> to vector<8x32xi32>
    %11 = arith.sitofp %10 : vector<8x32xi32> to vector<8x32xf32>
    %c0_3 = arith.constant 0 : index
    %c0_4 = arith.constant 0 : index
    %12 = vector.load %arg3[%c0_3, %c0_4] : memref<16x32xf32, #tpu.memory_space<vmem>>, vector<16x32xf32>
    %cst = arith.constant dense<0.000000e+00> : vector<8x32xf32>
    %13 = tpu.matmul %5, %12, %cst {dimension_numbers = #tpu.dot_dimension_numbers<[1], [0], [0], [1], [0, 0, 1, 1], [], []>} : vector<8x16xf32>, vector<16x32xf32>, vector<8x32xf32> -> vector<8x32xf32>
    %c0_5 = arith.constant 0 : index
    %c0_6 = arith.constant 0 : index
    %14 = vector.load %arg4[%c0_5, %c0_6] : memref<32x32xf32, #tpu.memory_space<vmem>>, vector<32x32xf32>
    %cst_7 = arith.constant dense<0.000000e+00> : vector<8x32xf32>
    %15 = tpu.matmul %11, %14, %cst_7 {dimension_numbers = #tpu.dot_dimension_numbers<[1], [0], [0], [1], [0, 0, 1, 1], [], []>} : vector<8x32xf32>, vector<32x32xf32>, vector<8x32xf32> -> vector<8x32xf32>
    %16 = arith.mulf %13, %15 : vector<8x32xf32>
    %cst_8 = arith.constant dense<0.000000e+00> : vector<8xf32>
    %17 = vector.multi_reduction <add>, %16, %cst_8 [1] : vector<8x32xf32> to vector<8xf32>
    %18 = vector.shape_cast %17 : vector<8xf32> to vector<1x8xf32>
    %c0_9 = arith.constant 0 : index
    %c0_10 = arith.constant 0 : index
    %19 = vector.load %arg5[%c0_9, %c0_10] : memref<1x8xf32, #tpu.memory_space<vmem>>, vector<1x8xf32>
    tpu.vector_store %arg5[%c0_9, %c0_10], %18 {strides = array<i32>} : memref<1x8xf32, #tpu.memory_space<vmem>>, vector<1x8xf32>,
    return
  }
  func.func @transform_0(%arg0: i32) -> (i32, i32) {
    %c0_i32 = arith.constant 0 : i32
    %c0_i32_0 = arith.constant 0 : i32
    return %arg0, %c0_i32 : i32, i32
  }
  func.func @transform_1(%arg0: i32) -> (i32, i32) {
    %c0_i32 = arith.constant 0 : i32
    %c0_i32_0 = arith.constant 0 : i32
    return %arg0, %c0_i32 : i32, i32
  }
  func.func @transform_2(%arg0: i32) -> (i32, i32) {
    %c0_i32 = arith.constant 0 : i32
    %c0_i32_0 = arith.constant 0 : i32
    %c0_i32_1 = arith.constant 0 : i32
    return %c0_i32, %c0_i32_0 : i32, i32
  }
  func.func @transform_3(%arg0: i32) -> (i32, i32) {
    %c0_i32 = arith.constant 0 : i32
    %c0_i32_0 = arith.constant 0 : i32
    %c0_i32_1 = arith.constant 0 : i32
    return %c0_i32, %c0_i32_0 : i32, i32
  }
  func.func @transform_4(%arg0: i32) -> (i32, i32) {
    %c0_i32 = arith.constant 0 : i32
    %c0_i32_0 = arith.constant 0 : i32
    return %c0_i32, %arg0 : i32, i32
  }
}

</mosaic_0001>

<llo_original>
// kernel: tpu_custom_call.1
$region0: #{tpu_custom_call.1}
  #allocation0 [shape = 'u32[]', space=smem, size = 0x4, offset = 0x4, fixed_abs, tag = 'smem constant byte address 0x4 - core index']
  #allocation1 [shape = 'u32[144,128]{1,0:T(1,128)}', space=vmem, size = 0x12000, scoped, tag = 'internal scratch']
  %s0 = inlined_call_operand.vmem [shape: s32[8,1], index: 0, kind: input, shape index: {}]
  %s1 = inlined_call_operand.vmem [shape: s32[8,1], index: 1, kind: input, shape index: {}]
  %s2 = inlined_call_operand.vmem [shape: f32[16,32], index: 2, kind: input, shape index: {}]
  %s3 = inlined_call_operand.hbm [shape: f32[32,32], index: 3, kind: input, shape index: {}]
  %s4 = inlined_call_operand.hbm [shape: f32[1,8], index: 4, kind: output, shape index: {}]
  %s5 = sld [smem:[#allocation0]]
  $region30: #{tpu_custom_call.1} parent=0
    _
  %s7 = ssub.s32 1, %s5
  %s8 = scalar_select 0, %s7, %s5
  $region1: #{tpu_custom_call.1} parent=0
    #allocation2 [shape = 'u8[16384]{0}', space=vmem, size = 0x4000, scoped, tag = 'input window, operand 3, single buffered']
    #allocation3 [shape = 's32[1]{0}', space=sflag, size = 0x4, scoped, tag = 'scoped memory for tpu_custom_call.1']
    #allocation4 [shape = 's32[1]{0}', space=sflag, size = 0x4, scoped, tag = 'scoped memory for tpu_custom_call.1']
    #allocation5 [shape = 'u8[512]{0}', space=vmem, size = 0x400, scoped, tag = 'output window, operand 0, single buffered']
    %9 = vsyncpa [#allocation3], 0
    %10 = vsyncpa [#allocation4], 0
    // Predicated region
    $region2: #{tpu_custom_call.1} parent=1 // pred_check
      _
    $region3: #{tpu_custom_call.1} parent=1 // pred_check_branch
      %12 = sbr.rel (0) target = $region5
    $region4: #{tpu_custom_call.1} parent=1 // pred_region
      _
    $region5: #{tpu_custom_call.1} parent=1 // pred_fallthru
      _
    // Predicated region
    $region6: #{tpu_custom_call.1} parent=1 // pred_check
      _
    $region7: #{tpu_custom_call.1} parent=1 // pred_check_branch
      %14 = sbr.rel (0) target = $region9
    $region8: #{tpu_custom_call.1} parent=1 // pred_region
      _
    $region9: #{tpu_custom_call.1} parent=1 // pred_fallthru
      _
    // Predicated region
    $region10: #{tpu_custom_call.1} parent=1 // pred_check
      _
    $region11: #{tpu_custom_call.1} parent=1 // pred_check_branch
      %16 = sbr.rel (0) target = $region13
    $region12: #{tpu_custom_call.1} parent=1 // pred_region
      _
    $region13: #{tpu_custom_call.1} parent=1 // pred_fallthru
      _
    // Predicated region
    $region14: #{tpu_custom_call.1} parent=1 // pred_check
      _
    $region15: #{tpu_custom_call.1} parent=1 // pred_check_branch
      %18 = sbr.rel (0) target = $region17
    $region16: #{tpu_custom_call.1} parent=1 // pred_region
      %s20 = ssub.s32 512, 512
      %21 = vsyncadd [#allocation3], %s20
      %s22 = sshll.u32 [#allocation2], 4
      %s23 = int_to_ptr.vmem [resolvable:$true] %s22
      %28 = dma.hbm_to_vmem [thread:$0]  %s3, 512, %s23, [#allocation3], 128, 128, 8
    $region17: #{tpu_custom_call.1} parent=1 // pred_fallthru
      _
    // Predicated region
    $region18: #{tpu_custom_call.1} parent=1 // pred_check
      _
    $region19: #{tpu_custom_call.1} parent=1 // pred_check_branch
      %30 = sbr.rel (0) target = $region21
    $region20: #{tpu_custom_call.1} parent=1 // pred_region
      %31 = dma.done [#allocation3], 512
    $region21: #{tpu_custom_call.1} parent=1 // pred_fallthru
      _
    %v32 = vld [vmem:[%s0] sm:$0xff]
    %v33 = vlaneseq
    %v34 = vand.u32 %v33, 127
    %35 = vset.pattern.permute.xlu0 0
    %36 = vperm.xlu0 %35, %v32
    %v37 = vpop.permute.xlu0 %36
    %vm38 = vcmp.eq.s32.totalorder %v37, %v34
    %v39 = vsel %vm38, 1, 0
    %v40 = vcvt.s32.f32 %v39
    %v41 = vld [vmem:[%s1] sm:$0xff]
    %42 = vset.pattern.permute.xlu0 0
    %43 = vperm.xlu0 %42, %v41
    %v44 = vpop.permute.xlu0 %43
    %vm45 = vcmp.eq.s32.totalorder %v44, %v34
    %v46 = vsel %vm45, 1, 0
    %v47 = vcvt.s32.f32 %v46
    %v48 = vld [vmem:[%s2] sm:$0xff]
    %v49 = vld [vmem:[%s2 + $0x8] sm:$0xff]
    %vm50 = vcmask 130048
    %v52 = vsel %vm50, %v40, 0
    %54 = vmatprep.subr.mxu0 0.0
    %55 = vmatpush1.msra.mxu0 %v48
    %56 = vmatprep.subr.mxu0 0.0
    %57 = vmatpush1.msra.mxu0 %v49
    %58 = vmatprep.subr.mxu0 0.0
    %59 = vmatpush1.msra.mxu0 0.0
    %60 = vmatprep.subr.mxu0 0.0
    %61 = vmatpush1.msra.mxu0 0.0
    %62 = vmatprep.subr.mxu0 0.0
    %63 = vmatpush1.msra.mxu0 0.0
    %64 = vmatprep.subr.mxu0 0.0
    %65 = vmatpush1.msra.mxu0 0.0
    %66 = vmatprep.subr.mxu0 0.0
    %67 = vmatpush1.msra.mxu0 0.0
    %68 = vmatprep.subr.mxu0 0.0
    %69 = vmatpush1.msra.mxu0 0.0
    %70 = vmatprep.subr.mxu0 0.0
    %71 = vmatpush1.msra.mxu0 0.0
    %72 = vmatprep.subr.mxu0 0.0
    %73 = vmatpush1.msra.mxu0 0.0
    %74 = vmatprep.subr.mxu0 0.0
    %75 = vmatpush1.msra.mxu0 0.0
    %76 = vmatprep.subr.mxu0 0.0
    %77 = vmatpush1.msra.mxu0 0.0
    %78 = vmatprep.subr.mxu0 0.0
    %79 = vmatpush1.msra.mxu0 0.0
    %80 = vmatprep.subr.mxu0 0.0
    %81 = vmatpush1.msra.mxu0 0.0
    %82 = vmatprep.subr.mxu0 0.0
    %83 = vmatpush1.msra.mxu0 0.0
    %84 = vmatprep.subr.mxu0 0.0
    %85 = vmatpush1.msra.mxu0 0.0
    %86 = vmatprep.subr.mxu0 0.0
    %87 = vmatpush1.msra.mxu0 0.0
    %88 = vmatprep.subr.mxu0 0.0
    %89 = vmatpush1.msra.mxu0 0.0
    %90 = vmatprep.subr.mxu0 0.0
    %91 = vmatpush1.msra.mxu0 0.0
    %92 = vmatprep.subr.mxu0 0.0
    %93 = vmatpush1.msra.mxu0 0.0
    %94 = vmatprep.subr.mxu0 0.0
    %95 = vmatpush1.msra.mxu0 0.0
    %96 = vmatprep.subr.mxu0 0.0
    %97 = vmatpush1.msra.mxu0 0.0
    %98 = vmatprep.subr.mxu0 0.0
    %99 = vmatpush1.msra.mxu0 0.0
    %100 = vmatprep.subr.mxu0 0.0
    %101 = vmatpush1.msra.mxu0 0.0
    %102 = vmatprep.subr.mxu0 0.0
    %103 = vmatpush1.msra.mxu0 0.0
    %104 = vmatprep.subr.mxu0 0.0
    %105 = vmatpush1.msra.mxu0 0.0
    %106 = vmatprep.subr.mxu0 0.0
    %107 = vmatpush1.msra.mxu0 0.0
    %108 = vmatprep.subr.mxu0 0.0
    %109 = vmatpush1.msra.mxu0 0.0
    %110 = vmatprep.subr.mxu0 0.0
    %111 = vmatpush1.msra.mxu0 0.0
    %112 = vmatprep.subr.mxu0 0.0
    %113 = vmatpush1.msra.mxu0 0.0
    %114 = vmatprep.subr.mxu0 0.0
    %115 = vmatpush1.msra.mxu0 0.0
    %116 = vmatprep.subr.mxu0 0.0
    %117 = vmatpush1.msra.mxu0 0.0
    %118 = vmatprep.mubr.f32.mxu0 0.0
    %119 = vmatmul.mubr.f32.gmra.mrb[0].mxu0 %v52
    %v120 = vpop.f32.mrb[0].mxu0
    %v121 = vadd.f32 0.0, %v120
    %v122 = vpop.f32.mrb[0].mxu0
    %123 = vdwg.mxu0
    %v124 = vld [vmem:[#allocation2] sm:$0xff]
    %v125 = vld [vmem:[#allocation2 + $0x8] sm:$0xff]
    %v126 = vld [vmem:[#allocation2 + $0x10] sm:$0xff]
    %v127 = vld [vmem:[#allocation2 + $0x18] sm:$0xff]
    %vm128 = vcmask 261120
    %v130 = vsel %vm128, %v47, 0
    %132 = vmatprep.subr.mxu0 0.0
    %133 = vmatpush1.msra.mxu0 %v124
    %134 = vmatprep.subr.mxu0 0.0
    %135 = vmatpush1.msra.mxu0 %v125
    %136 = vmatprep.subr.mxu0 0.0
    %137 = vmatpush1.msra.mxu0 %v126
    %138 = vmatprep.subr.mxu0 0.0
    %139 = vmatpush1.msra.mxu0 %v127
    %140 = vmatprep.subr.mxu0 0.0
    %141 = vmatpush1.msra.mxu0 0.0
    %142 = vmatprep.subr.mxu0 0.0
    %143 = vmatpush1.msra.mxu0 0.0
    %144 = vmatprep.subr.mxu0 0.0
    %145 = vmatpush1.msra.mxu0 0.0
    %146 = vmatprep.subr.mxu0 0.0
    %147 = vmatpush1.msra.mxu0 0.0
    %148 = vmatprep.subr.mxu0 0.0
    %149 = vmatpush1.msra.mxu0 0.0
    %150 = vmatprep.subr.mxu0 0.0
    %151 = vmatpush1.msra.mxu0 0.0
    %152 = vmatprep.subr.mxu0 0.0
    %153 = vmatpush1.msra.mxu0 0.0
    %154 = vmatprep.subr.mxu0 0.0
    %155 = vmatpush1.msra.mxu0 0.0
    %156 = vmatprep.subr.mxu0 0.0
    %157 = vmatpush1.msra.mxu0 0.0
    %158 = vmatprep.subr.mxu0 0.0
    %159 = vmatpush1.msra.mxu0 0.0
    %160 = vmatprep.subr.mxu0 0.0
    %161 = vmatpush1.msra.mxu0 0.0
    %162 = vmatprep.subr.mxu0 0.0
    %163 = vmatpush1.msra.mxu0 0.0
    %164 = vmatprep.subr.mxu0 0.0
    %165 = vmatpush1.msra.mxu0 0.0
    %166 = vmatprep.subr.mxu0 0.0
    %167 = vmatpush1.msra.mxu0 0.0
    %168 = vmatprep.subr.mxu0 0.0
    %169 = vmatpush1.msra.mxu0 0.0
    %170 = vmatprep.subr.mxu0 0.0
    %171 = vmatpush1.msra.mxu0 0.0
    %172 = vmatprep.subr.mxu0 0.0
    %173 = vmatpush1.msra.mxu0 0.0
    %174 = vmatprep.subr.mxu0 0.0
    %175 = vmatpush1.msra.mxu0 0.0
    %176 = vmatprep.subr.mxu0 0.0
    %177 = vmatpush1.msra.mxu0 0.0
    %178 = vmatprep.subr.mxu0 0.0
    %179 = vmatpush1.msra.mxu0 0.0
    %180 = vmatprep.subr.mxu0 0.0
    %181 = vmatpush1.msra.mxu0 0.0
    %182 = vmatprep.subr.mxu0 0.0
    %183 = vmatpush1.msra.mxu0 0.0
    %184 = vmatprep.subr.mxu0 0.0
    %185 = vmatpush1.msra.mxu0 0.0
    %186 = vmatprep.subr.mxu0 0.0
    %187 = vmatpush1.msra.mxu0 0.0
    %188 = vmatprep.subr.mxu0 0.0
    %189 = vmatpush1.msra.mxu0 0.0
    %190 = vmatprep.subr.mxu0 0.0
    %191 = vmatpush1.msra.mxu0 0.0
    %192 = vmatprep.subr.mxu0 0.0
    %193 = vmatpush1.msra.mxu0 0.0
    %194 = vmatprep.subr.mxu0 0.0
    %195 = vmatpush1.msra.mxu0 0.0
    %196 = vmatprep.mubr.f32.mxu0 0.0
    %197 = vmatmul.mubr.f32.gmra.mrb[0].mxu0 %v130
    %v198 = vpop.f32.mrb[0].mxu0
    %v199 = vadd.f32 0.0, %v198
    %v200 = vpop.f32.mrb[0].mxu0
    %201 = vdwg.mxu0
    %v202 = vmul.f32 %v121, %v199
    %v203 = vsel %vm128, %v202, 0.0
    %204 = vadd.xlane.f32.xlu0 %v203
    %v205 = vpop.xlane.xlu0 %204
    %v207 = vlaneseq
    %v208 = vshrl.u32 %v207, 7
    %v209 = vsub.s32 %v34, %v208
    %v210 = vrot.slane %v205, %v209
    %vm212 = vcmask 57344
    %213 = vst.msk [vmem:[#allocation5] sm:$0x1] %vm212, %v210
    // Predicated region
    $region22: #{tpu_custom_call.1} parent=1 // pred_check
      _
    $region23: #{tpu_custom_call.1} parent=1 // pred_check_branch
      %215 = sbr.rel (0) target = $region25
    $region24: #{tpu_custom_call.1} parent=1 // pred_region
      %s217 = ssub.s32 16, 16
      %218 = vsyncadd [#allocation4], %s217
      %s220 = sshll.u32 [#allocation5], 4
      %s221 = int_to_ptr.vmem [resolvable:$true] %s220
      %223 = dma.vmem_to_hbm [thread:$0]  %s221, 16, %s4, [#allocation4]
    $region25: #{tpu_custom_call.1} parent=1 // pred_fallthru
      _
    // Predicated region
    $region26: #{tpu_custom_call.1} parent=1 // pred_check
      _
    $region27: #{tpu_custom_call.1} parent=1 // pred_check_branch
      %225 = sbr.rel (0) target = $region29
    $region28: #{tpu_custom_call.1} parent=1 // pred_region
      %226 = dma.done [#allocation4], 16
    $region29: #{tpu_custom_call.1} parent=1 // pred_fallthru
      _
    %227 = vsyncpa [#allocation3], 1
    %228 = vsyncpa [#allocation4], 1

</llo_original>
